<compile_context>
chip_gen: v7x
topology: tpu7x:2x2x1
jax: 0.10.0
libtpu: 0.0.40
codegen_flags: <defaults>
</compile_context>

<pallas_src>
import math

import jax
import jax.numpy as jnp
from jax.experimental import pallas as pl
from jax.experimental.pallas import tpu as pltpu


# --------------------------------------------------------------------------- #
# Kernels
# --------------------------------------------------------------------------- #
def _feature_kernel_scalar_ab(ab_ref, x_ref, y_ref, o_ref):
    # ab_ref is a (2,) float32 SMEM array: [alpha, beta].  Only x, y, out
    # stream through HBM (3 streams).
    a_pi = ab_ref[0] * jnp.pi          # hoisted: one scalar mul, reused twice
    b = ab_ref[1]
    r = b * jnp.sin(a_pi * x_ref[...]) * jnp.sin(a_pi * y_ref[...])
    o_ref[...] = r.astype(o_ref.dtype)


def _feature_kernel_dense(alpha_ref, beta_ref, x_ref, y_ref, o_ref):
    # alpha/beta are full (br, bc) tiles (5 streams).
    a_pi = alpha_ref[...] * jnp.pi     # hoisted: one VALU mul, reused twice
    r = beta_ref[...] * jnp.sin(a_pi * x_ref[...]) * jnp.sin(a_pi * y_ref[...])
    o_ref[...] = r.astype(o_ref.dtype)


# --------------------------------------------------------------------------- #
# Block-size selection
# --------------------------------------------------------------------------- #
def _choose_blocks(R, C, itemsize, min_itemsize, n_streams, vmem_cap):
    """Pick (block_rows, block_cols, vmem_limit_bytes) for the (R, C) view."""
    if vmem_cap >= (100 << 20):        # v5e / v6e: 128 MiB VMEM
        target = 4 << 20               # bytes per stream per block
        footprint_cap = 80 << 20       # 2 buffers x n_streams x block bytes
        vmem_hi = 96 << 20
    else:                              # v7x: 64 MiB VMEM per TensorCore
        target = 2 << 20
        footprint_cap = 40 << 20
        vmem_hi = 48 << 20             # headroom for internal scratch

    # Minimum sublane tile: 8 for f32, 16 for bf16, 32 for int8/fp8.
    min_sub = max(8, 32 // max(1, min_itemsize))

    # Column (lane) tiling only when even min_sub full-width rows overflow the
    # per-stream budget (1-D inputs / extremely wide rows).
    if C * itemsize * min_sub <= target:
        bc = C                                         # full-extent lanes
    else:
        bc = max(128, (target // (min_sub * itemsize)) // 128 * 128)
        bc = min(bc, C)

    # Row (sublane) tiling: aim for ~target bytes per stream per block, cap the
    # double-buffered footprint, keep sublane alignment.
    blk_row_bytes = bc * itemsize
    br = max(min_sub, (target // blk_row_bytes) // min_sub * min_sub)
    cap_rows = footprint_cap // (2 * n_streams * blk_row_bytes)
    if cap_rows >= min_sub:
        br = min(br, (cap_rows // min_sub) * min_sub)
    else:
        br = min_sub
    if br >= R:
        br = R                                         # full-extent block

    # Ensure enough grid steps for pipelining / v7x dual-TC (>=4 per core), as
    # long as each stream block stays >= 512 KiB.
    min_blocks = 8
    min_block_bytes = 512 << 10
    while True:
        n_blocks = (-(-R // br)) * (-(-C // bc))
        if n_blocks >= min_blocks or br <= min_sub:
            break
        new_br = max(min_sub, ((br // 2) // min_sub) * min_sub)
        if new_br >= br or new_br * bc * itemsize < min_block_bytes:
            break
        br = new_br

    footprint = 2 * n_streams * br * bc * itemsize
    vmem_limit = int(min(vmem_hi, max(32 << 20, footprint + (8 << 20))))
    return br, bc, vmem_limit


# --------------------------------------------------------------------------- #
# Wrapper
# --------------------------------------------------------------------------- #
def _my_feature(alpha, beta, x, y):
    """beta * sin(alpha*x*pi) * sin(alpha*y*pi) with NumPy-style broadcasting."""
    alpha = jnp.asarray(alpha)
    beta = jnp.asarray(beta)
    x = jnp.asarray(x)
    y = jnp.asarray(y)

    out_dtype = jnp.result_type(alpha.dtype, beta.dtype, x.dtype, y.dtype)
    shape = jnp.broadcast_shapes(alpha.shape, beta.shape, x.shape, y.shape)
    n_elems = math.prod(shape) if shape else 1
    if n_elems == 0:
        return jnp.zeros(shape, out_dtype)

    # Lane-dense 2-D view: collapse leading dims into rows, last dim -> lanes.
    if len(shape) == 0:
        R, C = 1, 1
    elif len(shape) == 1:
        R, C = 1, shape[0]
    else:
        R, C = math.prod(shape[:-1]), shape[-1]
    if C % 128 != 0:
        # Re-view flat as (N/L, L), L a multiple of 128, when divisible, so the
        # output stores are unmasked full-width vst (biggest measured lever).
        for lanes in (2048, 1024, 512, 384, 256, 128):
            if n_elems % lanes == 0:
                R, C = n_elems // lanes, lanes
                break
        # else: fall back to (R, C) with masked edge stores (correct, slower).

    scalar_ab = (alpha.size == 1) and (beta.size == 1)
    n_streams = 3 if scalar_ab else 5          # (x, y, out) [+ alpha, beta]
    if scalar_ab:
        stream_dtypes = (x.dtype, y.dtype, out_dtype)
    else:
        stream_dtypes = (alpha.dtype, beta.dtype, x.dtype, y.dtype, out_dtype)
    itemsizes = [jnp.dtype(d).itemsize for d in stream_dtypes]

    vmem_cap = 64 << 20                        # conservative default (v7x-sized)
    try:
        vmem_cap = int(getattr(pltpu.get_tpu_info(), "vmem_capacity_bytes",
                               vmem_cap))
    except Exception:
        pass

    br, bc, vmem_limit = _choose_blocks(
        R, C, max(itemsizes), min(itemsizes), n_streams, vmem_cap)
    grid = (-(-R // br), -(-C // bc))
    dense_spec = pl.BlockSpec((br, bc), lambda i, j: (i, j))
    cparams = pltpu.CompilerParams(
        dimension_semantics=("parallel", "parallel"),
        vmem_limit_bytes=vmem_limit,
    )

    def as_view(a):
        # No dtype cast here (the kernel promotes and casts on store).
        # broadcast_to is a no-op for full-shape arrays; reshape of contiguous
        # data is free.
        if a.shape != shape:
            a = jnp.broadcast_to(a, shape)
        return a.reshape(R, C)

    if scalar_ab:
        ab = jnp.stack([alpha.reshape(()), beta.reshape(())]).astype(jnp.float32)
        out = pl.pallas_call(
            _feature_kernel_scalar_ab,
            out_shape=jax.ShapeDtypeStruct((R, C), out_dtype),
            grid_spec=pl.GridSpec(
                grid=grid,
                in_specs=[pl.BlockSpec(memory_space=pltpu.MemorySpace.SMEM),
                          dense_spec, dense_spec],
                out_specs=dense_spec,
            ),
            compiler_params=cparams,
        )(ab, as_view(x), as_view(y))
    else:
        # TODO(synk): when alpha/beta broadcast only along leading dims, a
        # dedicated BlockSpec index_map folding the row-block index into the
        # smaller array would avoid this broadcast materialization entirely.
        out = pl.pallas_call(
            _feature_kernel_dense,
            out_shape=jax.ShapeDtypeStruct((R, C), out_dtype),
            grid_spec=pl.GridSpec(
                grid=grid,
                in_specs=[dense_spec, dense_spec, dense_spec, dense_spec],
                out_specs=dense_spec,
            ),
            compiler_params=cparams,
        )(as_view(alpha), as_view(beta), as_view(x), as_view(y))

    return out.reshape(shape)


def my_feature(inputs):
    """Mirrors myFeature.forward(x) where x is a dict with alpha/beta/x/y."""
    return _my_feature(inputs["alpha"], inputs["beta"], inputs["x"], inputs["y"])


def _reference(alpha, beta, x, y):
    return beta * jnp.sin(alpha * x * jnp.pi) * jnp.sin(alpha * y * jnp.pi)


# --------------------------------------------------------------------------- #
# Self-test
# --------------------------------------------------------------------------- #
if __name__ == "__main__":
    key = jax.random.PRNGKey(0)

    # Case 1: tutorial-style dict input, scalar alpha/beta, 4-D x/y with small
    # last dim (exercises SMEM path + lane-dense flat re-view, N=2048 -> (1,2048)).
    k_x, k_y, key = jax.random.split(key, 3)
    shape1 = (2, 4, 16, 16)
    inp1 = {
        "alpha": jnp.float32(1.3),
        "beta": jnp.float32(0.7),
        "x": jax.random.uniform(k_x, shape1, jnp.float32, -1.0, 1.0),
        "y": jax.random.uniform(k_y, shape1, jnp.float32, -1.0, 1.0),
    }
    out1 = jax.block_until_ready(my_feature(inp1))
    ref1 = _reference(inp1["alpha"], inp1["beta"], inp1["x"], inp1["y"])
    assert out1.shape == shape1
    assert jnp.allclose(out1, ref1, atol=1e-5, rtol=1e-5)

    # Case 2: dense (tensor) alpha/beta, lane-aligned last dim (dense 5-stream path).
    k_a, k_b, k_x, k_y, key = jax.random.split(key, 5)
    shape2 = (8, 256)
    a2 = jax.random.uniform(k_a, shape2, jnp.float32, 0.5, 2.0)
    b2 = jax.random.uniform(k_b, shape2, jnp.float32, 0.5, 2.0)
    x2 = jax.random.uniform(k_x, shape2, jnp.float32, -1.0, 1.0)
    y2 = jax.random.uniform(k_y, shape2, jnp.float32, -1.0, 1.0)
    out2 = jax.block_until_ready(
        my_feature({"alpha": a2, "beta": b2, "x": x2, "y": y2}))
    assert jnp.allclose(out2, _reference(a2, b2, x2, y2), atol=1e-5, rtol=1e-5)

    # Case 3: non-lane-friendly ragged shape (3, 25): N=75 has no 128-multiple
    # factor -> full-extent (3, 25) block with masked stores; still correct.
    k_x, k_y = jax.random.split(key, 2)
    shape3 = (3, 25)
    a3 = jnp.float32(0.9)
    b3 = jnp.float32(1.1)
    x3 = jax.random.uniform(k_x, shape3, jnp.float32, -1.0, 1.0)
    y3 = jax.random.uniform(k_y, shape3, jnp.float32, -1.0, 1.0)
    out3 = jax.block_until_ready(
        my_feature({"alpha": a3, "beta": b3, "x": x3, "y": y3}))
    assert jnp.allclose(out3, _reference(a3, b3, x3, y3), atol=1e-5, rtol=1e-5)

    print("KERNEL_OK")
</pallas_src>

<mosaic_0001>
module attributes {stable_mosaic.version = 11 : i64} {
  func.func @_feature_kernel_scalar_ab(%arg0: i32, %arg1: i32, %arg2: memref<2xf32, #tpu.memory_space<smem>>, %arg3: memref<1x2048xf32, #tpu.memory_space<vmem>>, %arg4: memref<1x2048xf32, #tpu.memory_space<vmem>>, %arg5: memref<1x2048xf32, #tpu.memory_space<vmem>>) attributes {dimension_semantics = [#tpu.dimension_semantics<parallel>, #tpu.dimension_semantics<parallel>], iteration_bounds = array<i64: 1, 1>, scalar_prefetch = 0 : i64, scratch_operands = 0 : i64, tpu.core_type = #tpu.core_type<tc>, window_params = [{transform_indices = @transform_0, window_bounds = array<i64: 2>}, {transform_indices = @transform_1, window_bounds = array<i64: 1, 2048>}, {transform_indices = @transform_2, window_bounds = array<i64: 1, 2048>}, {transform_indices = @transform_3, window_bounds = array<i64: 1, 2048>}]} {
    %c0 = arith.constant 0 : index
    %0 = memref.load %arg2[%c0] : memref<2xf32, #tpu.memory_space<smem>>
    %cst = arith.constant 3.14159274 : f32
    %1 = arith.mulf %0, %cst : f32
    %c1 = arith.constant 1 : index
    %2 = memref.load %arg2[%c1] : memref<2xf32, #tpu.memory_space<smem>>
    %c0_0 = arith.constant 0 : index
    %c0_1 = arith.constant 0 : index
    %3 = vector.load %arg3[%c0_0, %c0_1] : memref<1x2048xf32, #tpu.memory_space<vmem>>, vector<1x2048xf32>
    %4 = vector.broadcast %1 : f32 to vector<1x2048xf32>
    %5 = arith.mulf %4, %3 : vector<1x2048xf32>
    %6 = math.sin %5 : vector<1x2048xf32>
    %7 = vector.broadcast %2 : f32 to vector<1x2048xf32>
    %8 = arith.mulf %7, %6 : vector<1x2048xf32>
    %c0_2 = arith.constant 0 : index
    %c0_3 = arith.constant 0 : index
    %9 = vector.load %arg4[%c0_2, %c0_3] : memref<1x2048xf32, #tpu.memory_space<vmem>>, vector<1x2048xf32>
    %10 = vector.broadcast %1 : f32 to vector<1x2048xf32>
    %11 = arith.mulf %10, %9 : vector<1x2048xf32>
    %12 = math.sin %11 : vector<1x2048xf32>
    %13 = arith.mulf %8, %12 : vector<1x2048xf32>
    %c0_4 = arith.constant 0 : index
    %c0_5 = arith.constant 0 : index
    %14 = vector.load %arg5[%c0_4, %c0_5] : memref<1x2048xf32, #tpu.memory_space<vmem>>, vector<1x2048xf32>
    tpu.vector_store %arg5[%c0_4, %c0_5], %13 {strides = array<i32>} : memref<1x2048xf32, #tpu.memory_space<vmem>>, vector<1x2048xf32>,
    return
  }
  func.func @transform_0(%arg0: i32, %arg1: i32) -> i32 {
    %c0_i32 = arith.constant 0 : i32
    %c0_i32_0 = arith.constant 0 : i32
    return %c0_i32 : i32
  }
  func.func @transform_1(%arg0: i32, %arg1: i32) -> (i32, i32) {
    %c0_i32 = arith.constant 0 : i32
    return %arg0, %arg1 : i32, i32
  }
  func.func @transform_2(%arg0: i32, %arg1: i32) -> (i32, i32) {
    %c0_i32 = arith.constant 0 : i32
    return %arg0, %arg1 : i32, i32
  }
  func.func @transform_3(%arg0: i32, %arg1: i32) -> (i32, i32) {
    %c0_i32 = arith.constant 0 : i32
    return %arg0, %arg1 : i32, i32
  }
}

</mosaic_0001>

<llo_original>
// kernel: tpu_custom_call.1
$region0: #{tpu_custom_call.1}
  #allocation0 [shape = 'u32[]', space=smem, size = 0x4, offset = 0x4, fixed_abs, tag = 'smem constant byte address 0x4 - core index']
  #allocation1 [shape = 'u32[144,128]{1,0:T(1,128)}', space=vmem, size = 0x12000, scoped, tag = 'internal scratch']
  %s0 = inlined_call_operand.hbm [shape: f32[2], index: 0, kind: input, shape index: {}]
  %s1 = inlined_call_operand.hbm [shape: f32[1,2048], index: 1, kind: input, shape index: {}]
  %s2 = inlined_call_operand.hbm [shape: f32[1,2048], index: 2, kind: input, shape index: {}]
  %s3 = inlined_call_operand.hbm [shape: f32[1,2048], index: 3, kind: output, shape index: {}]
  %s4 = sld [smem:[#allocation0]]
  $region34: #{tpu_custom_call.1} parent=0
    _
  %s6 = ssub.s32 1, %s4
  %s7 = scalar_select 0, %s6, %s4
  $region1: #{tpu_custom_call.1} parent=0
    #allocation2 [shape = 'u8[512]{0}', space=smem, size = 0x200, scoped, tag = 'input window, operand 0, single buffered']
    #allocation3 [shape = 's32[1]{0}', space=sflag, size = 0x4, scoped, tag = 'scoped memory for tpu_custom_call.1']
    #allocation4 [shape = 's32[1]{0}', space=sflag, size = 0x4, scoped, tag = 'scoped memory for tpu_custom_call.1']
    #allocation5 [shape = 's32[1]{0}', space=sflag, size = 0x4, scoped, tag = 'scoped memory for tpu_custom_call.1']
    #allocation6 [shape = 'u8[8192]{0}', space=vmem, size = 0x2000, scoped, tag = 'input window, operand 1, single buffered']
    #allocation7 [shape = 'u8[8192]{0}', space=vmem, size = 0x2000, scoped, tag = 'input window, operand 2, single buffered']
    #allocation8 [shape = 's32[1]{0}', space=sflag, size = 0x4, scoped, tag = 'scoped memory for tpu_custom_call.1']
    #allocation9 [shape = 'u8[8192]{0}', space=vmem, size = 0x2000, scoped, tag = 'output window, operand 0, single buffered']
    %8 = vsyncpa [#allocation5], 0
    %9 = vsyncpa [#allocation3], 0
    %10 = vsyncpa [#allocation8], 0
    %11 = vsyncpa [#allocation4], 0
    // Predicated region
    $region2: #{tpu_custom_call.1} parent=1 // pred_check
      _
    $region3: #{tpu_custom_call.1} parent=1 // pred_check_branch
      %13 = sbr.rel (0) target = $region5
    $region4: #{tpu_custom_call.1} parent=1 // pred_region
      %s15 = ssub.s32 16, 16
      %16 = vsyncadd [#allocation5], %s15
      %19 = dma.hbm_to_smem %s0, 16, [#allocation2], [#allocation5]
    $region5: #{tpu_custom_call.1} parent=1 // pred_fallthru
      _
    // Predicated region
    $region6: #{tpu_custom_call.1} parent=1 // pred_check
      _
    $region7: #{tpu_custom_call.1} parent=1 // pred_check_branch
      %21 = sbr.rel (0) target = $region9
    $region8: #{tpu_custom_call.1} parent=1 // pred_region
      %s23 = ssub.s32 256, 256
      %24 = vsyncadd [#allocation3], %s23
      %s26 = sshll.u32 [#allocation6], 4
      %s27 = int_to_ptr.vmem [resolvable:$true] %s26
      %29 = dma.hbm_to_vmem [thread:$0]  %s1, 256, %s27, [#allocation3]
    $region9: #{tpu_custom_call.1} parent=1 // pred_fallthru
      _
    // Predicated region
    $region10: #{tpu_custom_call.1} parent=1 // pred_check
      _
    $region11: #{tpu_custom_call.1} parent=1 // pred_check_branch
      %31 = sbr.rel (0) target = $region13
    $region12: #{tpu_custom_call.1} parent=1 // pred_region
      %s33 = ssub.s32 256, 256
      %34 = vsyncadd [#allocation8], %s33
      %s36 = sshll.u32 [#allocation7], 4
      %s37 = int_to_ptr.vmem [resolvable:$true] %s36
      %39 = dma.hbm_to_vmem [thread:$0]  %s2, 256, %s37, [#allocation8]
    $region13: #{tpu_custom_call.1} parent=1 // pred_fallthru
      _
    // Predicated region
    $region14: #{tpu_custom_call.1} parent=1 // pred_check
      _
    $region15: #{tpu_custom_call.1} parent=1 // pred_check_branch
      %41 = sbr.rel (0) target = $region17
    $region16: #{tpu_custom_call.1} parent=1 // pred_region
      %42 = dma.done [#allocation5], 16
    $region17: #{tpu_custom_call.1} parent=1 // pred_fallthru
      _
    // Predicated region
    $region18: #{tpu_custom_call.1} parent=1 // pred_check
      _
    $region19: #{tpu_custom_call.1} parent=1 // pred_check_branch
      %44 = sbr.rel (0) target = $region21
    $region20: #{tpu_custom_call.1} parent=1 // pred_region
      %45 = dma.done [#allocation3], 256
    $region21: #{tpu_custom_call.1} parent=1 // pred_fallthru
      _
    // Predicated region
    $region22: #{tpu_custom_call.1} parent=1 // pred_check
      _
    $region23: #{tpu_custom_call.1} parent=1 // pred_check_branch
      %47 = sbr.rel (0) target = $region25
    $region24: #{tpu_custom_call.1} parent=1 // pred_region
      %48 = dma.done [#allocation8], 256
    $region25: #{tpu_custom_call.1} parent=1 // pred_fallthru
      _
    %49 = sfence
    %s50 = sld [smem:[#allocation2]]
    %s51 = smul.f32 %s50, 3.1415927
    %s52 = sld [smem:[#allocation2 + $0x1]]
    %v53 = vld [vmem:[#allocation6] sm:$0xff]
    %v54 = vld [vmem:[#allocation6 + $0x8] sm:$0xff]
    %v55 = vstv %s51
    %v56 = vmul.f32 %v55, %v53
    %v57 = vmul.f32 %v55, %v54
    %v58 = vand.u32 2147483647, %v56
    %vm59 = vcmp.le.f32.partialorder %v58, 0.7853982
    %vm60 = vcmp.lt.s32.totalorder %v56, 0
    %v61 = vand.u32 %v56, 2139095040
    %v62 = vshrl.u32 %v61, 23
    %v63 = vsub.s32 %v62, 127
    %v64 = vand.u32 2147483647, %v56
    %v65 = vand.u32 %v64, 8388607
    %v66 = vor.u32 %v65, 8388608
    %v67 = vsub.s32 0, %v66
    %v68 = vadd.s32 %v63, 1
    %vm69 = vcmp.gt.s32.totalorder %v68, 0
    %v70 = vsel %vm69, %v68, 0
    %v71 = vshrl.u32 %v70, 5
    %v72 = vand.u32 %v70, 31
    %v73 = vsub.s32 32, %v72
    %v74 = vshrl.u32 683565275, %v73
    %v75 = vshll.u32 683565275, %v72
    %v76 = vshrl.u32 2475754826, %v73
    %v77 = vor.u32 %v75, %v76
    %v78 = vshll.u32 2475754826, %v72
    %v79 = vshrl.u32 2131351028, %v73
    %v80 = vor.u32 %v78, %v79
    %v81 = vshll.u32 2131351028, %v72
    %v82 = vshrl.u32 2102212464, %v73
    %v83 = vor.u32 %v81, %v82
    %v84 = vshll.u32 2102212464, %v72
    %v85 = vshrl.u32 920167782, %v73
    %v86 = vor.u32 %v84, %v85
    %v87 = vshll.u32 920167782, %v72
    %v88 = vshrl.u32 1326507024, %v73
    %v89 = vor.u32 %v87, %v88
    %vm90 = vcmp.lt.s32.totalorder %v71, 1
    %vm91 = vcmp.lt.s32.totalorder %v71, 2
    %vm92 = vcmp.lt.s32.totalorder %v71, 3
    %vm93 = vcmp.lt.s32.totalorder %v71, 4
    %v94 = vsel %vm90, %v74, %v77
    %v95 = vsel %vm93, %v83, 2102212464
    %v96 = vsel %vm92, %v80, %v95
    %v97 = vsel %vm91, %v94, %v96
    %v98 = vsel %vm90, %v77, %v80
    %v99 = vsel %vm93, %v86, 920167782
    %v100 = vsel %vm92, %v83, %v99
    %v101 = vsel %vm91, %v98, %v100
    %v102 = vsel %vm90, %v80, %v83
    %v103 = vsel %vm93, %v89, 1326507024
    %v104 = vsel %vm92, %v86, %v103
    %v105 = vsel %vm91, %v102, %v104
    %v106 = vshll.u32 %v66, 8
    %v107 = vmul.u32.u64.compose %v106, %v105
    %v108 = vextract.low.u32 %v107
    %v109 = vextract.high.u32 %v107
    %v110 = vmul.u32.u64.compose %v106, %v101
    %v111 = vextract.low.u32 %v110
    %v112 = vextract.high.u32 %v110
    %v113 = vmul.u32 %v106, %v97
    %v114 = vadd.s32 %v109, %v111
    %vm115 = vc.u32 %v109, %v111
    %v116 = vadd.s32 %v112, 1
    %v117 = vsel %vm115, %v116, %v112
    %v118 = vadd.s32 %v113, %v117
    %v119 = vadd.s32 %v118, 536870912
    %v120 = vshrl.u32 %v119, 30
    %v121 = vshll.u32 %v120, 30
    %v122 = vsub.s32 %v118, %v121
    %vm123 = vcmp.lt.s32.totalorder %v122, 0
    %v124 = vsub.s32 0, %v122
    %v125 = vsel %vm123, %v124, %v122
    %v126 = vclz %v125
    %v127 = vsub.s32 %v126, 2
    %vm128 = vcmp.gt.s32.totalorder 0, %v127
    %v129 = vsel %vm128, 0, %v127
    %v130 = vsub.s32 32, %v129
    %v131 = vshll.u32 %v122, %v129
    %v132 = vshrl.u32 %v114, %v130
    %v133 = vor.u32 %v131, %v132
    %v134 = vsub.s32 4294967266, %v129
    %v135 = vadd.s32 %v134, 127
    %v136 = vshll.u32 %v135, 23
    %v137 = vor.u32 4788187, %v136
    %v138 = vand.u32 2147483647, %v137
    %v140 = vcvt.s32.f32 %v133
    %v141 = vmul.f32 %v140, %v138
    %v142 = vxor.u32 %v141, 2147483648
    %v143 = vsel %vm60, %v142, %v141
    %v144 = vsub.s32 4, %v120
    %v145 = vsel %vm60, %v144, %v120
    %v146 = vsel %vm59, %v56, %v143
    %v147 = vsel %vm59, 0, %v145
    %v148 = vcosq.f32.pop %v146
    %v149 = vsinq.f32.pop %v146
    %vm150 = vweird.f32 %v56
    %v151 = vadd.s32 %v147, 3
    %v152 = vand.u32 %v151, 3
    %vm153 = vcmp.lt.s32.totalorder %v152, 2
    %vm154 = vcmp.eq.s32.totalorder %v152, 0
    %v155 = vxor.u32 %v149, 2147483648
    %v156 = vsel %vm154, %v148, %v155
    %vm157 = vcmp.eq.s32.totalorder %v152, 2
    %v158 = vxor.u32 %v148, 2147483648
    %v159 = vsel %vm157, %v158, %v149
    %v160 = vsel %vm153, %v156, %v159
    %v161 = vsel %vm150, nan, %v160
    %v162 = vand.u32 2147483647, %v57
    %vm163 = vcmp.le.f32.partialorder %v162, 0.7853982
    %vm164 = vcmp.lt.s32.totalorder %v57, 0
    %v165 = vand.u32 %v57, 2139095040
    %v166 = vshrl.u32 %v165, 23
    %v167 = vsub.s32 %v166, 127
    %v168 = vand.u32 2147483647, %v57
    %v169 = vand.u32 %v168, 8388607
    %v170 = vor.u32 %v169, 8388608
    %v171 = vsub.s32 0, %v170
    %v172 = vadd.s32 %v167, 1
    %vm173 = vcmp.gt.s32.totalorder %v172, 0
    %v174 = vsel %vm173, %v172, 0
    %v175 = vshrl.u32 %v174, 5
    %v176 = vand.u32 %v174, 31
    %v177 = vsub.s32 32, %v176
    %v178 = vshrl.u32 683565275, %v177
    %v179 = vshll.u32 683565275, %v176
    %v180 = vshrl.u32 2475754826, %v177
    %v181 = vor.u32 %v179, %v180
    %v182 = vshll.u32 2475754826, %v176
    %v183 = vshrl.u32 2131351028, %v177
    %v184 = vor.u32 %v182, %v183
    %v185 = vshll.u32 2131351028, %v176
    %v186 = vshrl.u32 2102212464, %v177
    %v187 = vor.u32 %v185, %v186
    %v188 = vshll.u32 2102212464, %v176
    %v189 = vshrl.u32 920167782, %v177
    %v190 = vor.u32 %v188, %v189
    %v191 = vshll.u32 920167782, %v176
    %v192 = vshrl.u32 1326507024, %v177
    %v193 = vor.u32 %v191, %v192
    %vm194 = vcmp.lt.s32.totalorder %v175, 1
    %vm195 = vcmp.lt.s32.totalorder %v175, 2
    %vm196 = vcmp.lt.s32.totalorder %v175, 3
    %vm197 = vcmp.lt.s32.totalorder %v175, 4
    %v198 = vsel %vm194, %v178, %v181
    %v199 = vsel %vm197, %v187, 2102212464
    %v200 = vsel %vm196, %v184, %v199
    %v201 = vsel %vm195, %v198, %v200
    %v202 = vsel %vm194, %v181, %v184
    %v203 = vsel %vm197, %v190, 920167782
    %v204 = vsel %vm196, %v187, %v203
    %v205 = vsel %vm195, %v202, %v204
    %v206 = vsel %vm194, %v184, %v187
    %v207 = vsel %vm197, %v193, 1326507024
    %v208 = vsel %vm196, %v190, %v207
    %v209 = vsel %vm195, %v206, %v208
    %v210 = vshll.u32 %v170, 8
    %v211 = vmul.u32.u64.compose %v210, %v209
    %v212 = vextract.low.u32 %v211
    %v213 = vextract.high.u32 %v211
    %v214 = vmul.u32.u64.compose %v210, %v205
    %v215 = vextract.low.u32 %v214
    %v216 = vextract.high.u32 %v214
    %v217 = vmul.u32 %v210, %v201
    %v218 = vadd.s32 %v213, %v215
    %vm219 = vc.u32 %v213, %v215
    %v220 = vadd.s32 %v216, 1
    %v221 = vsel %vm219, %v220, %v216
    %v222 = vadd.s32 %v217, %v221
    %v223 = vadd.s32 %v222, 536870912
    %v224 = vshrl.u32 %v223, 30
    %v225 = vshll.u32 %v224, 30
    %v226 = vsub.s32 %v222, %v225
    %vm227 = vcmp.lt.s32.totalorder %v226, 0
    %v228 = vsub.s32 0, %v226
    %v229 = vsel %vm227, %v228, %v226
    %v230 = vclz %v229
    %v231 = vsub.s32 %v230, 2
    %vm232 = vcmp.gt.s32.totalorder 0, %v231
    %v233 = vsel %vm232, 0, %v231
    %v234 = vsub.s32 32, %v233
    %v235 = vshll.u32 %v226, %v233
    %v236 = vshrl.u32 %v218, %v234
    %v237 = vor.u32 %v235, %v236
    %v238 = vsub.s32 4294967266, %v233
    %v239 = vadd.s32 %v238, 127
    %v240 = vshll.u32 %v239, 23
    %v241 = vor.u32 4788187, %v240
    %v242 = vand.u32 2147483647, %v241
    %v244 = vcvt.s32.f32 %v237
    %v245 = vmul.f32 %v244, %v242
    %v246 = vxor.u32 %v245, 2147483648
    %v247 = vsel %vm164, %v246, %v245
    %v248 = vsub.s32 4, %v224
    %v249 = vsel %vm164, %v248, %v224
    %v250 = vsel %vm163, %v57, %v247
    %v251 = vsel %vm163, 0, %v249
    %v252 = vcosq.f32.pop %v250
    %v253 = vsinq.f32.pop %v250
    %vm254 = vweird.f32 %v57
    %v255 = vadd.s32 %v251, 3
    %v256 = vand.u32 %v255, 3
    %vm257 = vcmp.lt.s32.totalorder %v256, 2
    %vm258 = vcmp.eq.s32.totalorder %v256, 0
    %v259 = vxor.u32 %v253, 2147483648
    %v260 = vsel %vm258, %v252, %v259
    %vm261 = vcmp.eq.s32.totalorder %v256, 2
    %v262 = vxor.u32 %v252, 2147483648
    %v263 = vsel %vm261, %v262, %v253
    %v264 = vsel %vm257, %v260, %v263
    %v265 = vsel %vm254, nan, %v264
    %v266 = vstv %s52
    %v267 = vmul.f32 %v266, %v161
    %v268 = vmul.f32 %v266, %v265
    %v269 = vld [vmem:[#allocation7] sm:$0xff]
    %v270 = vld [vmem:[#allocation7 + $0x8] sm:$0xff]
    %v271 = vmul.f32 %v55, %v269
    %v272 = vmul.f32 %v55, %v270
    %v273 = vand.u32 2147483647, %v271
    %vm274 = vcmp.le.f32.partialorder %v273, 0.7853982
    %vm275 = vcmp.lt.s32.totalorder %v271, 0
    %v276 = vand.u32 %v271, 2139095040
    %v277 = vshrl.u32 %v276, 23
    %v278 = vsub.s32 %v277, 127
    %v279 = vand.u32 2147483647, %v271
    %v280 = vand.u32 %v279, 8388607
    %v281 = vor.u32 %v280, 8388608
    %v282 = vsub.s32 0, %v281
    %v283 = vadd.s32 %v278, 1
    %vm284 = vcmp.gt.s32.totalorder %v283, 0
    %v285 = vsel %vm284, %v283, 0
    %v286 = vshrl.u32 %v285, 5
    %v287 = vand.u32 %v285, 31
    %v288 = vsub.s32 32, %v287
    %v289 = vshrl.u32 683565275, %v288
    %v290 = vshll.u32 683565275, %v287
    %v291 = vshrl.u32 2475754826, %v288
    %v292 = vor.u32 %v290, %v291
    %v293 = vshll.u32 2475754826, %v287
    %v294 = vshrl.u32 2131351028, %v288
    %v295 = vor.u32 %v293, %v294
    %v296 = vshll.u32 2131351028, %v287
    %v297 = vshrl.u32 2102212464, %v288
    %v298 = vor.u32 %v296, %v297
    %v299 = vshll.u32 2102212464, %v287
    %v300 = vshrl.u32 920167782, %v288
    %v301 = vor.u32 %v299, %v300
    %v302 = vshll.u32 920167782, %v287
    %v303 = vshrl.u32 1326507024, %v288
    %v304 = vor.u32 %v302, %v303
    %vm305 = vcmp.lt.s32.totalorder %v286, 1
    %vm306 = vcmp.lt.s32.totalorder %v286, 2
    %vm307 = vcmp.lt.s32.totalorder %v286, 3
    %vm308 = vcmp.lt.s32.totalorder %v286, 4
    %v309 = vsel %vm305, %v289, %v292
    %v310 = vsel %vm308, %v298, 2102212464
    %v311 = vsel %vm307, %v295, %v310
    %v312 = vsel %vm306, %v309, %v311
    %v313 = vsel %vm305, %v292, %v295
    %v314 = vsel %vm308, %v301, 920167782
    %v315 = vsel %vm307, %v298, %v314
    %v316 = vsel %vm306, %v313, %v315
    %v317 = vsel %vm305, %v295, %v298
    %v318 = vsel %vm308, %v304, 1326507024
    %v319 = vsel %vm307, %v301, %v318
    %v320 = vsel %vm306, %v317, %v319
    %v321 = vshll.u32 %v281, 8
    %v322 = vmul.u32.u64.compose %v321, %v320
    %v323 = vextract.low.u32 %v322
    %v324 = vextract.high.u32 %v322
    %v325 = vmul.u32.u64.compose %v321, %v316
    %v326 = vextract.low.u32 %v325
    %v327 = vextract.high.u32 %v325
    %v328 = vmul.u32 %v321, %v312
    %v329 = vadd.s32 %v324, %v326
    %vm330 = vc.u32 %v324, %v326
    %v331 = vadd.s32 %v327, 1
    %v332 = vsel %vm330, %v331, %v327
    %v333 = vadd.s32 %v328, %v332
    %v334 = vadd.s32 %v333, 536870912
    %v335 = vshrl.u32 %v334, 30
    %v336 = vshll.u32 %v335, 30
    %v337 = vsub.s32 %v333, %v336
    %vm338 = vcmp.lt.s32.totalorder %v337, 0
    %v339 = vsub.s32 0, %v337
    %v340 = vsel %vm338, %v339, %v337
    %v341 = vclz %v340
    %v342 = vsub.s32 %v341, 2
    %vm343 = vcmp.gt.s32.totalorder 0, %v342
    %v344 = vsel %vm343, 0, %v342
    %v345 = vsub.s32 32, %v344
    %v346 = vshll.u32 %v337, %v344
    %v347 = vshrl.u32 %v329, %v345
    %v348 = vor.u32 %v346, %v347
    %v349 = vsub.s32 4294967266, %v344
    %v350 = vadd.s32 %v349, 127
    %v351 = vshll.u32 %v350, 23
    %v352 = vor.u32 4788187, %v351
    %v353 = vand.u32 2147483647, %v352
    %v355 = vcvt.s32.f32 %v348
    %v356 = vmul.f32 %v355, %v353
    %v357 = vxor.u32 %v356, 2147483648
    %v358 = vsel %vm275, %v357, %v356
    %v359 = vsub.s32 4, %v335
    %v360 = vsel %vm275, %v359, %v335
    %v361 = vsel %vm274, %v271, %v358
    %v362 = vsel %vm274, 0, %v360
    %v363 = vcosq.f32.pop %v361
    %v364 = vsinq.f32.pop %v361
    %vm365 = vweird.f32 %v271
    %v366 = vadd.s32 %v362, 3
    %v367 = vand.u32 %v366, 3
    %vm368 = vcmp.lt.s32.totalorder %v367, 2
    %vm369 = vcmp.eq.s32.totalorder %v367, 0
    %v370 = vxor.u32 %v364, 2147483648
    %v371 = vsel %vm369, %v363, %v370
    %vm372 = vcmp.eq.s32.totalorder %v367, 2
    %v373 = vxor.u32 %v363, 2147483648
    %v374 = vsel %vm372, %v373, %v364
    %v375 = vsel %vm368, %v371, %v374
    %v376 = vsel %vm365, nan, %v375
    %v377 = vand.u32 2147483647, %v272
    %vm378 = vcmp.le.f32.partialorder %v377, 0.7853982
    %vm379 = vcmp.lt.s32.totalorder %v272, 0
    %v380 = vand.u32 %v272, 2139095040
    %v381 = vshrl.u32 %v380, 23
    %v382 = vsub.s32 %v381, 127
    %v383 = vand.u32 2147483647, %v272
    %v384 = vand.u32 %v383, 8388607
    %v385 = vor.u32 %v384, 8388608
    %v386 = vsub.s32 0, %v385
    %v387 = vadd.s32 %v382, 1
    %vm388 = vcmp.gt.s32.totalorder %v387, 0
    %v389 = vsel %vm388, %v387, 0
    %v390 = vshrl.u32 %v389, 5
    %v391 = vand.u32 %v389, 31
    %v392 = vsub.s32 32, %v391
    %v393 = vshrl.u32 683565275, %v392
    %v394 = vshll.u32 683565275, %v391
    %v395 = vshrl.u32 2475754826, %v392
    %v396 = vor.u32 %v394, %v395
    %v397 = vshll.u32 2475754826, %v391
    %v398 = vshrl.u32 2131351028, %v392
    %v399 = vor.u32 %v397, %v398
    %v400 = vshll.u32 2131351028, %v391
    %v401 = vshrl.u32 2102212464, %v392
    %v402 = vor.u32 %v400, %v401
    %v403 = vshll.u32 2102212464, %v391
    %v404 = vshrl.u32 920167782, %v392
    %v405 = vor.u32 %v403, %v404
    %v406 = vshll.u32 920167782, %v391
    %v407 = vshrl.u32 1326507024, %v392
    %v408 = vor.u32 %v406, %v407
    %vm409 = vcmp.lt.s32.totalorder %v390, 1
    %vm410 = vcmp.lt.s32.totalorder %v390, 2
    %vm411 = vcmp.lt.s32.totalorder %v390, 3
    %vm412 = vcmp.lt.s32.totalorder %v390, 4
    %v413 = vsel %vm409, %v393, %v396
    %v414 = vsel %vm412, %v402, 2102212464
    %v415 = vsel %vm411, %v399, %v414
    %v416 = vsel %vm410, %v413, %v415
    %v417 = vsel %vm409, %v396, %v399
    %v418 = vsel %vm412, %v405, 920167782
    %v419 = vsel %vm411, %v402, %v418
    %v420 = vsel %vm410, %v417, %v419
    %v421 = vsel %vm409, %v399, %v402
    %v422 = vsel %vm412, %v408, 1326507024
    %v423 = vsel %vm411, %v405, %v422
    %v424 = vsel %vm410, %v421, %v423
    %v425 = vshll.u32 %v385, 8
    %v426 = vmul.u32.u64.compose %v425, %v424
    %v427 = vextract.low.u32 %v426
    %v428 = vextract.high.u32 %v426
    %v429 = vmul.u32.u64.compose %v425, %v420
    %v430 = vextract.low.u32 %v429
    %v431 = vextract.high.u32 %v429
    %v432 = vmul.u32 %v425, %v416
    %v433 = vadd.s32 %v428, %v430
    %vm434 = vc.u32 %v428, %v430
    %v435 = vadd.s32 %v431, 1
    %v436 = vsel %vm434, %v435, %v431
    %v437 = vadd.s32 %v432, %v436
    %v438 = vadd.s32 %v437, 536870912
    %v439 = vshrl.u32 %v438, 30
    %v440 = vshll.u32 %v439, 30
    %v441 = vsub.s32 %v437, %v440
    %vm442 = vcmp.lt.s32.totalorder %v441, 0
    %v443 = vsub.s32 0, %v441
    %v444 = vsel %vm442, %v443, %v441
    %v445 = vclz %v444
    %v446 = vsub.s32 %v445, 2
    %vm447 = vcmp.gt.s32.totalorder 0, %v446
    %v448 = vsel %vm447, 0, %v446
    %v449 = vsub.s32 32, %v448
    %v450 = vshll.u32 %v441, %v448
    %v451 = vshrl.u32 %v433, %v449
    %v452 = vor.u32 %v450, %v451
    %v453 = vsub.s32 4294967266, %v448
    %v454 = vadd.s32 %v453, 127
    %v455 = vshll.u32 %v454, 23
    %v456 = vor.u32 4788187, %v455
    %v457 = vand.u32 2147483647, %v456
    %v459 = vcvt.s32.f32 %v452
    %v460 = vmul.f32 %v459, %v457
    %v461 = vxor.u32 %v460, 2147483648
    %v462 = vsel %vm379, %v461, %v460
    %v463 = vsub.s32 4, %v439
    %v464 = vsel %vm379, %v463, %v439
    %v465 = vsel %vm378, %v272, %v462
    %v466 = vsel %vm378, 0, %v464
    %v467 = vcosq.f32.pop %v465
    %v468 = vsinq.f32.pop %v465
    %vm469 = vweird.f32 %v272
    %v470 = vadd.s32 %v466, 3
    %v471 = vand.u32 %v470, 3
    %vm472 = vcmp.lt.s32.totalorder %v471, 2
    %vm473 = vcmp.eq.s32.totalorder %v471, 0
    %v474 = vxor.u32 %v468, 2147483648
    %v475 = vsel %vm473, %v467, %v474
    %vm476 = vcmp.eq.s32.totalorder %v471, 2
    %v477 = vxor.u32 %v467, 2147483648
    %v478 = vsel %vm476, %v477, %v468
    %v479 = vsel %vm472, %v475, %v478
    %v480 = vsel %vm469, nan, %v479
    %v481 = vmul.f32 %v267, %v376
    %v482 = vmul.f32 %v268, %v480
    %483 = vst [vmem:[#allocation9] sm:$0xff] %v481
    %484 = vst [vmem:[#allocation9 + $0x8] sm:$0xff] %v482
    // Predicated region
    $region26: #{tpu_custom_call.1} parent=1 // pred_check
      _
    $region27: #{tpu_custom_call.1} parent=1 // pred_check_branch
      %486 = sbr.rel (0) target = $region29
    $region28: #{tpu_custom_call.1} parent=1 // pred_region
      %s488 = ssub.s32 256, 256
      %489 = vsyncadd [#allocation4], %s488
      %s491 = sshll.u32 [#allocation9], 4
      %s492 = int_to_ptr.vmem [resolvable:$true] %s491
      %494 = dma.vmem_to_hbm [thread:$0]  %s492, 256, %s3, [#allocation4]
    $region29: #{tpu_custom_call.1} parent=1 // pred_fallthru
      _
    // Predicated region
    $region30: #{tpu_custom_call.1} parent=1 // pred_check
      _
    $region31: #{tpu_custom_call.1} parent=1 // pred_check_branch
      %496 = sbr.rel (0) target = $region33
    $region32: #{tpu_custom_call.1} parent=1 // pred_region
      %497 = dma.done [#allocation4], 256
    $region33: #{tpu_custom_call.1} parent=1 // pred_fallthru
      _
    %498 = vsyncpa [#allocation3], 1
    %499 = vsyncpa [#allocation8], 1
    %500 = vsyncpa [#allocation4], 1
    %501 = vsyncpa [#allocation5], 1

</llo_original>
